<compile_context>
chip_gen: v7x
topology: tpu7x:2x2x1
jax: 0.10.0
libtpu: 0.0.40
codegen_flags: <defaults>
</compile_context>

<pallas_src>
import jax
import jax.numpy as jnp
from jax.experimental import pallas as pl
from jax.experimental.pallas import tpu as pltpu

EPS = 1e-5  # torch.nn.LayerNorm default


def _round_up(x, m):
    return (x + m - 1) // m * m


def prenorm_linear_kernel(x_ref, gb_ref, w_ref, b_ref, o_ref, y_ref):
    # Grid: (row tiles i, output-column tiles j); j is the inner (arbitrary) axis.
    j = pl.program_id(1)

    # LayerNorm the (tm, D) row tile once per i, cache bf16 result in VMEM.
    @pl.when(j == 0)
    def _():
        x = x_ref[...].astype(jnp.float32)
        mean = jnp.mean(x, axis=-1, keepdims=True)
        centered = x - mean
        var = jnp.mean(centered * centered, axis=-1, keepdims=True)
        xhat = centered * jax.lax.rsqrt(var + EPS)
        gb = gb_ref[...].astype(jnp.float32)          # (2, D): [gamma; beta]
        y = xhat * gb[0:1, :] + gb[1:2, :]
        y_ref[...] = y.astype(y_ref.dtype)            # bf16 for the MXU

    # fn = Linear(dim, dim): bf16 x bf16 -> f32 accumulate on the MXU.
    out = jnp.dot(y_ref[...], w_ref[...], preferred_element_type=jnp.float32)
    out = out + b_ref[...].astype(jnp.float32)        # (1, tn) bias broadcast
    o_ref[...] = out.astype(o_ref.dtype)


def prenorm_linear(x, gamma, beta, w, b, *, tm=256, tn=None):
    """x: (B, S, D) -> (B, S, D).  Fused LayerNorm(dim) + Linear(dim, dim)."""
    B, S, D = x.shape
    N = B * S

    # Row tile: multiple of 8 (sublane), clamped so tiny inputs don't over-pad.
    tm = min(tm, _round_up(N, 8))
    tm = _round_up(tm, 8)
    N_pad = _round_up(N, tm)

    # Output-column tile: full D when small / not divisible, else 512-wide
    # lane-dense slabs so the weight streams through VMEM.
    if tn is None:
        tn = 512 if (D % 512 == 0 and D > 512) else D
    assert D % tn == 0 and (tn == D or tn % 128 == 0)

    x2 = x.reshape(N, D)
    if N_pad > N:
        x2 = jnp.pad(x2, ((0, N_pad - N), (0, 0)))

    gb = jnp.stack([gamma, beta]).astype(jnp.float32)     # (2, D)
    w_bf16 = w.astype(jnp.bfloat16)                       # (D, D)
    b2 = b.reshape(1, D).astype(jnp.float32)              # (1, D)

    out = pl.pallas_call(
        prenorm_linear_kernel,
        out_shape=jax.ShapeDtypeStruct((N_pad, D), x.dtype),
        grid_spec=pltpu.PrefetchScalarGridSpec(
            num_scalar_prefetch=0,
            grid=(N_pad // tm, D // tn),
            in_specs=[
                pl.BlockSpec((tm, D), lambda i, j: (i, 0)),   # x row tile
                pl.BlockSpec((2, D), lambda i, j: (0, 0)),    # gamma/beta
                pl.BlockSpec((D, tn), lambda i, j: (0, j)),   # weight slab
                pl.BlockSpec((1, tn), lambda i, j: (0, j)),   # bias slab
            ],
            out_specs=pl.BlockSpec((tm, tn), lambda i, j: (i, j)),
            scratch_shapes=[pltpu.VMEM((tm, D), jnp.bfloat16)],  # cached norm
        ),
        compiler_params=pltpu.CompilerParams(
            dimension_semantics=("parallel", "arbitrary"),
            vmem_limit_bytes=64 * 1024 * 1024,
        ),
    )(x2, gb, w_bf16, b2)

    return out[:N].reshape(B, S, D)


def reference(x, gamma, beta, w, b):
    xf = x.astype(jnp.float32)
    mean = jnp.mean(xf, axis=-1, keepdims=True)
    var = jnp.mean((xf - mean) ** 2, axis=-1, keepdims=True)
    y = (xf - mean) * jax.lax.rsqrt(var + EPS) * gamma + beta
    return (y @ w + b).astype(x.dtype)


if __name__ == "__main__":
    # Small but lane-dense shapes (D a multiple of 128).
    B, S, D = 2, 64, 128
    key = jax.random.PRNGKey(0)
    kx, kg, kbe, kw, kb = jax.random.split(key, 5)

    x = jax.random.normal(kx, (B, S, D), dtype=jnp.float32)
    gamma = 1.0 + 0.1 * jax.random.normal(kg, (D,), dtype=jnp.float32)
    beta = 0.1 * jax.random.normal(kbe, (D,), dtype=jnp.float32)
    w = jax.random.normal(kw, (D, D), dtype=jnp.float32) * 0.05
    b = jax.random.normal(kb, (D,), dtype=jnp.float32) * 0.01

    out = prenorm_linear(x, gamma, beta, w, b)
    out = jax.block_until_ready(out)

    ref = reference(x, gamma, beta, w, b)
    assert out.shape == (B, S, D)
    # Tolerance loosened vs. the f32 reference because the matmul runs with
    # bf16 operands (f32 accumulation) on the MXU.
    assert jnp.allclose(out, ref, atol=2e-2, rtol=2e-2), float(
        jnp.max(jnp.abs(out - ref))
    )

    print("KERNEL_OK")
</pallas_src>

<mosaic_0001>
module attributes {stable_mosaic.version = 11 : i64} {
  func.func @prenorm_linear_kernel(%arg0: i32, %arg1: i32, %arg2: memref<128x128xf32, #tpu.memory_space<vmem>>, %arg3: memref<2x128xf32, #tpu.memory_space<vmem>>, %arg4: memref<128x128xbf16, #tpu.memory_space<vmem>>, %arg5: memref<1x128xf32, #tpu.memory_space<vmem>>, %arg6: memref<128x128xf32, #tpu.memory_space<vmem>>, %arg7: memref<128x128xbf16, #tpu.memory_space<vmem>>) attributes {dimension_semantics = [#tpu.dimension_semantics<parallel>, #tpu.dimension_semantics<arbitrary>], iteration_bounds = array<i64: 1, 1>, scalar_prefetch = 0 : i64, scratch_operands = 1 : i64, tpu.core_type = #tpu.core_type<tc>, window_params = [{transform_indices = @transform_0, window_bounds = array<i64: 128, 128>}, {pipeline_mode = #tpu.pipeline_mode<synchronous>, transform_indices = @transform_1, window_bounds = array<i64: 2, 128>}, {transform_indices = @transform_2, window_bounds = array<i64: 128, 128>}, {transform_indices = @transform_3, window_bounds = array<i64: 1, 128>}, {transform_indices = @transform_4, window_bounds = array<i64: 128, 128>}]} {
    %c0_i32 = arith.constant 0 : i32
    %0 = arith.cmpi eq, %arg1, %c0_i32 : i32
    %1 = arith.extui %0 : i1 to i32
    %c0_i32_0 = arith.constant 0 : i32
    %2 = arith.cmpi ne, %1, %c0_i32_0 : i32
    scf.if %2 {
      %c0_8 = arith.constant 0 : index
      %c0_9 = arith.constant 0 : index
      %10 = vector.load %arg2[%c0_8, %c0_9] : memref<128x128xf32, #tpu.memory_space<vmem>>, vector<128x128xf32>
      %cst_10 = arith.constant dense<0.000000e+00> : vector<128xf32>
      %11 = vector.multi_reduction <add>, %10, %cst_10 [1] : vector<128x128xf32> to vector<128xf32>
      %12 = vector.shape_cast %11 : vector<128xf32> to vector<128x1xf32>
      %cst_11 = arith.constant 1.280000e+02 : f32
      %13 = vector.broadcast %cst_11 : f32 to vector<128x1xf32>
      %14 = arith.divf %12, %13 : vector<128x1xf32>
      %15 = vector.broadcast %14 : vector<128x1xf32> to vector<128x128xf32>
      %16 = arith.subf %10, %15 : vector<128x128xf32>
      %17 = arith.mulf %16, %16 : vector<128x128xf32>
      %cst_12 = arith.constant dense<0.000000e+00> : vector<128xf32>
      %18 = vector.multi_reduction <add>, %17, %cst_12 [1] : vector<128x128xf32> to vector<128xf32>
      %19 = vector.shape_cast %18 : vector<128xf32> to vector<128x1xf32>
      %cst_13 = arith.constant 1.280000e+02 : f32
      %20 = vector.broadcast %cst_13 : f32 to vector<128x1xf32>
      %21 = arith.divf %19, %20 : vector<128x1xf32>
      %cst_14 = arith.constant 9.99999974E-6 : f32
      %22 = vector.broadcast %cst_14 : f32 to vector<128x1xf32>
      %23 = arith.addf %21, %22 : vector<128x1xf32>
      %24 = math.rsqrt %23 : vector<128x1xf32>
      %25 = vector.broadcast %24 : vector<128x1xf32> to vector<128x128xf32>
      %26 = arith.mulf %16, %25 : vector<128x128xf32>
      %c0_15 = arith.constant 0 : index
      %c0_16 = arith.constant 0 : index
      %27 = vector.load %arg3[%c0_15, %c0_16] : memref<2x128xf32, #tpu.memory_space<vmem>>, vector<2x128xf32>
      %28 = vector.extract_strided_slice %27 {offsets = [0, 0], sizes = [1, 128], strides = [1, 1]} : vector<2x128xf32> to vector<1x128xf32>
      %29 = vector.broadcast %28 : vector<1x128xf32> to vector<128x128xf32>
      %30 = arith.mulf %26, %29 : vector<128x128xf32>
      %31 = vector.extract_strided_slice %27 {offsets = [1, 0], sizes = [1, 128], strides = [1, 1]} : vector<2x128xf32> to vector<1x128xf32>
      %32 = vector.broadcast %31 : vector<1x128xf32> to vector<128x128xf32>
      %33 = arith.addf %30, %32 : vector<128x128xf32>
      %34 = arith.truncf %33 : vector<128x128xf32> to vector<128x128xbf16>
      %c0_17 = arith.constant 0 : index
      %c0_18 = arith.constant 0 : index
      %35 = vector.load %arg7[%c0_17, %c0_18] : memref<128x128xbf16, #tpu.memory_space<vmem>>, vector<128x128xbf16>
      tpu.vector_store %arg7[%c0_17, %c0_18], %34 {strides = array<i32>} : memref<128x128xbf16, #tpu.memory_space<vmem>>, vector<128x128xbf16>,
    } else {
    }
    %c0 = arith.constant 0 : index
    %c0_1 = arith.constant 0 : index
    %3 = vector.load %arg7[%c0, %c0_1] : memref<128x128xbf16, #tpu.memory_space<vmem>>, vector<128x128xbf16>
    %c0_2 = arith.constant 0 : index
    %c0_3 = arith.constant 0 : index
    %4 = vector.load %arg4[%c0_2, %c0_3] : memref<128x128xbf16, #tpu.memory_space<vmem>>, vector<128x128xbf16>
    %cst = arith.constant dense<0.000000e+00> : vector<128x128xf32>
    %5 = tpu.matmul %3, %4, %cst {dimension_numbers = #tpu.dot_dimension_numbers<[1], [0], [0], [1], [0, 0, 1, 1], [], []>} : vector<128x128xbf16>, vector<128x128xbf16>, vector<128x128xf32> -> vector<128x128xf32>
    %c0_4 = arith.constant 0 : index
    %c0_5 = arith.constant 0 : index
    %6 = vector.load %arg5[%c0_4, %c0_5] : memref<1x128xf32, #tpu.memory_space<vmem>>, vector<1x128xf32>
    %7 = vector.broadcast %6 : vector<1x128xf32> to vector<128x128xf32>
    %8 = arith.addf %5, %7 : vector<128x128xf32>
    %c0_6 = arith.constant 0 : index
    %c0_7 = arith.constant 0 : index
    %9 = vector.load %arg6[%c0_6, %c0_7] : memref<128x128xf32, #tpu.memory_space<vmem>>, vector<128x128xf32>
    tpu.vector_store %arg6[%c0_6, %c0_7], %8 {strides = array<i32>} : memref<128x128xf32, #tpu.memory_space<vmem>>, vector<128x128xf32>,
    return
  }
  func.func @transform_0(%arg0: i32, %arg1: i32) -> (i32, i32) {
    %c0_i32 = arith.constant 0 : i32
    %c0_i32_0 = arith.constant 0 : i32
    return %arg0, %c0_i32 : i32, i32
  }
  func.func @transform_1(%arg0: i32, %arg1: i32) -> (i32, i32) {
    %c0_i32 = arith.constant 0 : i32
    %c0_i32_0 = arith.constant 0 : i32
    %c0_i32_1 = arith.constant 0 : i32
    return %c0_i32, %c0_i32_0 : i32, i32
  }
  func.func @transform_2(%arg0: i32, %arg1: i32) -> (i32, i32) {
    %c0_i32 = arith.constant 0 : i32
    %c0_i32_0 = arith.constant 0 : i32
    return %c0_i32, %arg1 : i32, i32
  }
  func.func @transform_3(%arg0: i32, %arg1: i32) -> (i32, i32) {
    %c0_i32 = arith.constant 0 : i32
    %c0_i32_0 = arith.constant 0 : i32
    return %c0_i32, %arg1 : i32, i32
  }
  func.func @transform_4(%arg0: i32, %arg1: i32) -> (i32, i32) {
    %c0_i32 = arith.constant 0 : i32
    return %arg0, %arg1 : i32, i32
  }
}

</mosaic_0001>

<llo_original>
// kernel: tpu_custom_call.1
$region0: #{tpu_custom_call.1}
  #allocation0 [shape = 'u32[]', space=smem, size = 0x4, offset = 0x4, fixed_abs, tag = 'smem constant byte address 0x4 - core index']
  #allocation1 [shape = 'u32[144,128]{1,0:T(1,128)}', space=vmem, size = 0x12000, scoped, tag = 'internal scratch']
  #allocation2 [shape = 'bf16[128,128]{1,0:T(16,128)(2,1)}', space=vmem, size = 0x8000, scoped, tag = 'scratch operand']
  %s0 = inlined_call_operand.hbm [shape: f32[128,128], index: 0, kind: input, shape index: {}]
  %s1 = inlined_call_operand.hbm [shape: f32[2,128], index: 1, kind: input, shape index: {}]
  %s2 = inlined_call_operand.hbm [shape: bf16[128,128], index: 2, kind: input, shape index: {}]
  %s3 = inlined_call_operand.hbm [shape: f32[1,128], index: 3, kind: input, shape index: {}]
  %s4 = inlined_call_operand.hbm [shape: f32[128,128], index: 4, kind: output, shape index: {}]
  %s5 = sld [smem:[#allocation0]]
  $region46: #{tpu_custom_call.1} parent=0
    _
  %s7 = ssub.s32 1, %s5
  %s8 = scalar_select 0, %s7, %s5
  $region1: #{tpu_custom_call.1} parent=0
    #allocation3 [shape = 'u8[65536]{0}', space=vmem, size = 0x10000, scoped, tag = 'input window, operand 0, single buffered']
    #allocation4 [shape = 's32[1]{0}', space=sflag, size = 0x4, scoped, tag = 'scoped memory for tpu_custom_call.1']
    #allocation5 [shape = 's32[1]{0}', space=sflag, size = 0x4, scoped, tag = 'scoped memory for tpu_custom_call.1']
    #allocation6 [shape = 'u8[1024]{0}', space=vmem, size = 0x400, scoped, tag = 'input window, operand 1, single buffered']
    #allocation7 [shape = 's32[1]{0}', space=sflag, size = 0x4, scoped, tag = 'scoped memory for tpu_custom_call.1']
    #allocation8 [shape = 'u8[32768]{0}', space=vmem, size = 0x8000, scoped, tag = 'input window, operand 2, single buffered']
    #allocation9 [shape = 'u8[512]{0}', space=vmem, size = 0x400, scoped, tag = 'input window, operand 3, single buffered']
    #allocation10 [shape = 's32[1]{0}', space=sflag, size = 0x4, scoped, tag = 'scoped memory for tpu_custom_call.1']
    #allocation11 [shape = 'u8[65536]{0}', space=vmem, size = 0x10000, scoped, tag = 'output window, operand 0, single buffered']
    %9 = vsyncpa [#allocation4], 0
    %10 = vsyncpa [#allocation7], 0
    %11 = vsyncpa [#allocation10], 0
    %12 = vsyncpa [#allocation5], 0
    // Predicated region
    $region2: #{tpu_custom_call.1} parent=1 // pred_check
      _
    $region3: #{tpu_custom_call.1} parent=1 // pred_check_branch
      %14 = sbr.rel (0) target = $region5
    $region4: #{tpu_custom_call.1} parent=1 // pred_region
      %s16 = ssub.s32 2048, 2048
      %17 = vsyncadd [#allocation4], %s16
      %s18 = sshll.u32 [#allocation3], 4
      %s19 = int_to_ptr.vmem [resolvable:$true] %s18
      %24 = dma.hbm_to_vmem [thread:$0]  %s0, 2048, %s19, [#allocation4], 128, 128, 8
    $region5: #{tpu_custom_call.1} parent=1 // pred_fallthru
      _
    // Predicated region
    $region6: #{tpu_custom_call.1} parent=1 // pred_check
      _
    $region7: #{tpu_custom_call.1} parent=1 // pred_check_branch
      %26 = sbr.rel (0) target = $region9
    $region8: #{tpu_custom_call.1} parent=1 // pred_region
      %s28 = ssub.s32 32, 32
      %29 = vsyncadd [#allocation7], %s28
      %s31 = sshll.u32 [#allocation6], 4
      %s32 = int_to_ptr.vmem [resolvable:$true] %s31
      %34 = dma.hbm_to_vmem [thread:$0]  %s1, 32, %s32, [#allocation7]
    $region9: #{tpu_custom_call.1} parent=1 // pred_fallthru
      _
    // Predicated region
    $region10: #{tpu_custom_call.1} parent=1 // pred_check
      _
    $region11: #{tpu_custom_call.1} parent=1 // pred_check_branch
      %36 = sbr.rel (0) target = $region13
    $region12: #{tpu_custom_call.1} parent=1 // pred_region
      %s38 = ssub.s32 1024, 1024
      %39 = vsyncadd [#allocation7], %s38
      %s40 = sshll.u32 [#allocation8], 4
      %s41 = int_to_ptr.vmem [resolvable:$true] %s40
      %46 = dma.hbm_to_vmem [thread:$0]  %s2, 1024, %s41, [#allocation7], 64, 64, 4
    $region13: #{tpu_custom_call.1} parent=1 // pred_fallthru
      _
    // Predicated region
    $region14: #{tpu_custom_call.1} parent=1 // pred_check
      _
    $region15: #{tpu_custom_call.1} parent=1 // pred_check_branch
      %48 = sbr.rel (0) target = $region17
    $region16: #{tpu_custom_call.1} parent=1 // pred_region
      %s50 = ssub.s32 16, 16
      %51 = vsyncadd [#allocation10], %s50
      %s53 = sshll.u32 [#allocation9], 4
      %s54 = int_to_ptr.vmem [resolvable:$true] %s53
      %56 = dma.hbm_to_vmem [thread:$0]  %s3, 16, %s54, [#allocation10]
    $region17: #{tpu_custom_call.1} parent=1 // pred_fallthru
      _
    // Predicated region
    $region18: #{tpu_custom_call.1} parent=1 // pred_check
      _
    $region19: #{tpu_custom_call.1} parent=1 // pred_check_branch
      %58 = sbr.rel (0) target = $region21
    $region20: #{tpu_custom_call.1} parent=1 // pred_region
      %59 = dma.done [#allocation4], 2048
    $region21: #{tpu_custom_call.1} parent=1 // pred_fallthru
      _
    // Predicated region
    $region22: #{tpu_custom_call.1} parent=1 // pred_check
      _
    $region23: #{tpu_custom_call.1} parent=1 // pred_check_branch
      %61 = sbr.rel (0) target = $region25
    $region24: #{tpu_custom_call.1} parent=1 // pred_region
      %62 = dma.done [#allocation7], 32
    $region25: #{tpu_custom_call.1} parent=1 // pred_fallthru
      _
    // Predicated region
    $region26: #{tpu_custom_call.1} parent=1 // pred_check
      _
    $region27: #{tpu_custom_call.1} parent=1 // pred_check_branch
      %64 = sbr.rel (0) target = $region29
    $region28: #{tpu_custom_call.1} parent=1 // pred_region
      %65 = dma.done [#allocation7], 1024
    $region29: #{tpu_custom_call.1} parent=1 // pred_fallthru
      _
    // Predicated region
    $region30: #{tpu_custom_call.1} parent=1 // pred_check
      _
    $region31: #{tpu_custom_call.1} parent=1 // pred_check_branch
      %67 = sbr.rel (0) target = $region33
    $region32: #{tpu_custom_call.1} parent=1 // pred_region
      %68 = dma.done [#allocation10], 16
    $region33: #{tpu_custom_call.1} parent=1 // pred_fallthru
      _
    %p70 = scmp.eq.s32.totalorder 0, 0
    // Predicated region
    $region34: #{tpu_custom_call.1} parent=1 // pred_check
      %p71 = pneg %p70
    $region35: #{tpu_custom_call.1} parent=1 // pred_check_branch
      %73 = sbr.rel (%p71) target = $region37
    $region36: #{tpu_custom_call.1} parent=1 // pred_region
      %v74 = vld [vmem:[#allocation3] sm:$0xff]
      %v75 = vld [vmem:[#allocation3 + $0x8] sm:$0xff]
      %v76 = vld [vmem:[#allocation3 + $0x10] sm:$0xff]
      %v77 = vld [vmem:[#allocation3 + $0x18] sm:$0xff]
      %v78 = vld [vmem:[#allocation3 + $0x20] sm:$0xff]
      %v79 = vld [vmem:[#allocation3 + $0x28] sm:$0xff]
      %v80 = vld [vmem:[#allocation3 + $0x30] sm:$0xff]
      %v81 = vld [vmem:[#allocation3 + $0x38] sm:$0xff]
      %v82 = vld [vmem:[#allocation3 + $0x40] sm:$0xff]
      %v83 = vld [vmem:[#allocation3 + $0x48] sm:$0xff]
      %v84 = vld [vmem:[#allocation3 + $0x50] sm:$0xff]
      %v85 = vld [vmem:[#allocation3 + $0x58] sm:$0xff]
      %v86 = vld [vmem:[#allocation3 + $0x60] sm:$0xff]
      %v87 = vld [vmem:[#allocation3 + $0x68] sm:$0xff]
      %v88 = vld [vmem:[#allocation3 + $0x70] sm:$0xff]
      %v89 = vld [vmem:[#allocation3 + $0x78] sm:$0xff]
      %90 = vadd.xlane.f32.xlu0 %v74
      %v91 = vpop.xlane.xlu0 %90
      %92 = vadd.xlane.f32.xlu0 %v75
      %v93 = vpop.xlane.xlu0 %92
      %94 = vadd.xlane.f32.xlu0 %v76
      %v95 = vpop.xlane.xlu0 %94
      %96 = vadd.xlane.f32.xlu0 %v77
      %v97 = vpop.xlane.xlu0 %96
      %98 = vadd.xlane.f32.xlu0 %v78
      %v99 = vpop.xlane.xlu0 %98
      %100 = vadd.xlane.f32.xlu0 %v79
      %v101 = vpop.xlane.xlu0 %100
      %102 = vadd.xlane.f32.xlu0 %v80
      %v103 = vpop.xlane.xlu0 %102
      %104 = vadd.xlane.f32.xlu0 %v81
      %v105 = vpop.xlane.xlu0 %104
      %106 = vadd.xlane.f32.xlu0 %v82
      %v107 = vpop.xlane.xlu0 %106
      %108 = vadd.xlane.f32.xlu0 %v83
      %v109 = vpop.xlane.xlu0 %108
      %110 = vadd.xlane.f32.xlu0 %v84
      %v111 = vpop.xlane.xlu0 %110
      %112 = vadd.xlane.f32.xlu0 %v85
      %v113 = vpop.xlane.xlu0 %112
      %114 = vadd.xlane.f32.xlu0 %v86
      %v115 = vpop.xlane.xlu0 %114
      %116 = vadd.xlane.f32.xlu0 %v87
      %v117 = vpop.xlane.xlu0 %116
      %118 = vadd.xlane.f32.xlu0 %v88
      %v119 = vpop.xlane.xlu0 %118
      %120 = vadd.xlane.f32.xlu0 %v89
      %v121 = vpop.xlane.xlu0 %120
      %v122 = vrcp.pop 128.0
      %v123 = vmul.f32 %v91, %v122
      %v124 = vmul.f32 %v93, %v122
      %v125 = vmul.f32 %v95, %v122
      %v126 = vmul.f32 %v97, %v122
      %v127 = vmul.f32 %v99, %v122
      %v128 = vmul.f32 %v101, %v122
      %v129 = vmul.f32 %v103, %v122
      %v130 = vmul.f32 %v105, %v122
      %v131 = vmul.f32 %v107, %v122
      %v132 = vmul.f32 %v109, %v122
      %v133 = vmul.f32 %v111, %v122
      %v134 = vmul.f32 %v113, %v122
      %v135 = vmul.f32 %v115, %v122
      %v136 = vmul.f32 %v117, %v122
      %v137 = vmul.f32 %v119, %v122
      %v138 = vmul.f32 %v121, %v122
      %v139 = vsub.f32 %v74, %v123
      %v140 = vsub.f32 %v75, %v124
      %v141 = vsub.f32 %v76, %v125
      %v142 = vsub.f32 %v77, %v126
      %v143 = vsub.f32 %v78, %v127
      %v144 = vsub.f32 %v79, %v128
      %v145 = vsub.f32 %v80, %v129
      %v146 = vsub.f32 %v81, %v130
      %v147 = vsub.f32 %v82, %v131
      %v148 = vsub.f32 %v83, %v132
      %v149 = vsub.f32 %v84, %v133
      %v150 = vsub.f32 %v85, %v134
      %v151 = vsub.f32 %v86, %v135
      %v152 = vsub.f32 %v87, %v136
      %v153 = vsub.f32 %v88, %v137
      %v154 = vsub.f32 %v89, %v138
      %v155 = vmul.f32 %v139, %v139
      %v156 = vmul.f32 %v140, %v140
      %v157 = vmul.f32 %v141, %v141
      %v158 = vmul.f32 %v142, %v142
      %v159 = vmul.f32 %v143, %v143
      %v160 = vmul.f32 %v144, %v144
      %v161 = vmul.f32 %v145, %v145
      %v162 = vmul.f32 %v146, %v146
      %v163 = vmul.f32 %v147, %v147
      %v164 = vmul.f32 %v148, %v148
      %v165 = vmul.f32 %v149, %v149
      %v166 = vmul.f32 %v150, %v150
      %v167 = vmul.f32 %v151, %v151
      %v168 = vmul.f32 %v152, %v152
      %v169 = vmul.f32 %v153, %v153
      %v170 = vmul.f32 %v154, %v154
      %171 = vadd.xlane.f32.xlu0 %v155
      %v172 = vpop.xlane.xlu0 %171
      %173 = vadd.xlane.f32.xlu0 %v156
      %v174 = vpop.xlane.xlu0 %173
      %175 = vadd.xlane.f32.xlu0 %v157
      %v176 = vpop.xlane.xlu0 %175
      %177 = vadd.xlane.f32.xlu0 %v158
      %v178 = vpop.xlane.xlu0 %177
      %179 = vadd.xlane.f32.xlu0 %v159
      %v180 = vpop.xlane.xlu0 %179
      %181 = vadd.xlane.f32.xlu0 %v160
      %v182 = vpop.xlane.xlu0 %181
      %183 = vadd.xlane.f32.xlu0 %v161
      %v184 = vpop.xlane.xlu0 %183
      %185 = vadd.xlane.f32.xlu0 %v162
      %v186 = vpop.xlane.xlu0 %185
      %187 = vadd.xlane.f32.xlu0 %v163
      %v188 = vpop.xlane.xlu0 %187
      %189 = vadd.xlane.f32.xlu0 %v164
      %v190 = vpop.xlane.xlu0 %189
      %191 = vadd.xlane.f32.xlu0 %v165
      %v192 = vpop.xlane.xlu0 %191
      %193 = vadd.xlane.f32.xlu0 %v166
      %v194 = vpop.xlane.xlu0 %193
      %195 = vadd.xlane.f32.xlu0 %v167
      %v196 = vpop.xlane.xlu0 %195
      %197 = vadd.xlane.f32.xlu0 %v168
      %v198 = vpop.xlane.xlu0 %197
      %199 = vadd.xlane.f32.xlu0 %v169
      %v200 = vpop.xlane.xlu0 %199
      %201 = vadd.xlane.f32.xlu0 %v170
      %v202 = vpop.xlane.xlu0 %201
      %v203 = vmul.f32 %v172, %v122
      %v204 = vmul.f32 %v174, %v122
      %v205 = vmul.f32 %v176, %v122
      %v206 = vmul.f32 %v178, %v122
      %v207 = vmul.f32 %v180, %v122
      %v208 = vmul.f32 %v182, %v122
      %v209 = vmul.f32 %v184, %v122
      %v210 = vmul.f32 %v186, %v122
      %v211 = vmul.f32 %v188, %v122
      %v212 = vmul.f32 %v190, %v122
      %v213 = vmul.f32 %v192, %v122
      %v214 = vmul.f32 %v194, %v122
      %v215 = vmul.f32 %v196, %v122
      %v216 = vmul.f32 %v198, %v122
      %v217 = vmul.f32 %v200, %v122
      %v218 = vmul.f32 %v202, %v122
      %v219 = vadd.f32 %v203, 1e-05
      %v220 = vadd.f32 %v204, 1e-05
      %v221 = vadd.f32 %v205, 1e-05
      %v222 = vadd.f32 %v206, 1e-05
      %v223 = vadd.f32 %v207, 1e-05
      %v224 = vadd.f32 %v208, 1e-05
      %v225 = vadd.f32 %v209, 1e-05
      %v226 = vadd.f32 %v210, 1e-05
      %v227 = vadd.f32 %v211, 1e-05
      %v228 = vadd.f32 %v212, 1e-05
      %v229 = vadd.f32 %v213, 1e-05
      %v230 = vadd.f32 %v214, 1e-05
      %v231 = vadd.f32 %v215, 1e-05
      %v232 = vadd.f32 %v216, 1e-05
      %v233 = vadd.f32 %v217, 1e-05
      %v234 = vadd.f32 %v218, 1e-05
      %v235 = vrsqrt.pop %v219
      %v236 = vrsqrt.pop %v220
      %v237 = vrsqrt.pop %v221
      %v238 = vrsqrt.pop %v222
      %v239 = vrsqrt.pop %v223
      %v240 = vrsqrt.pop %v224
      %v241 = vrsqrt.pop %v225
      %v242 = vrsqrt.pop %v226
      %v243 = vrsqrt.pop %v227
      %v244 = vrsqrt.pop %v228
      %v245 = vrsqrt.pop %v229
      %v246 = vrsqrt.pop %v230
      %v247 = vrsqrt.pop %v231
      %v248 = vrsqrt.pop %v232
      %v249 = vrsqrt.pop %v233
      %v250 = vrsqrt.pop %v234
      %v251 = vmul.f32 %v139, %v235
      %v252 = vmul.f32 %v140, %v236
      %v253 = vmul.f32 %v141, %v237
      %v254 = vmul.f32 %v142, %v238
      %v255 = vmul.f32 %v143, %v239
      %v256 = vmul.f32 %v144, %v240
      %v257 = vmul.f32 %v145, %v241
      %v258 = vmul.f32 %v146, %v242
      %v259 = vmul.f32 %v147, %v243
      %v260 = vmul.f32 %v148, %v244
      %v261 = vmul.f32 %v149, %v245
      %v262 = vmul.f32 %v150, %v246
      %v263 = vmul.f32 %v151, %v247
      %v264 = vmul.f32 %v152, %v248
      %v265 = vmul.f32 %v153, %v249
      %v266 = vmul.f32 %v154, %v250
      %v267 = vld [vmem:[#allocation6] sm:$0x3]
      %v268 = vlaneseq
      %v269 = vshrl.u32 %v268, 7
      %v270 = vsub.s32 0, %v269
      %v271 = vrot.slane %v267, %v270
      %v272 = vmul.f32 %v251, %v271
      %v273 = vmul.f32 %v252, %v271
      %v274 = vmul.f32 %v253, %v271
      %v275 = vmul.f32 %v254, %v271
      %v276 = vmul.f32 %v255, %v271
      %v277 = vmul.f32 %v256, %v271
      %v278 = vmul.f32 %v257, %v271
      %v279 = vmul.f32 %v258, %v271
      %v280 = vmul.f32 %v259, %v271
      %v281 = vmul.f32 %v260, %v271
      %v282 = vmul.f32 %v261, %v271
      %v283 = vmul.f32 %v262, %v271
      %v284 = vmul.f32 %v263, %v271
      %v285 = vmul.f32 %v264, %v271
      %v286 = vmul.f32 %v265, %v271
      %v287 = vmul.f32 %v266, %v271
      %v288 = vlaneseq
      %v289 = vshrl.u32 %v288, 7
      %v290 = vsub.s32 1, %v289
      %v291 = vrot.slane %v267, %v290
      %v292 = vadd.f32 %v272, %v291
      %v293 = vadd.f32 %v273, %v291
      %v294 = vadd.f32 %v274, %v291
      %v295 = vadd.f32 %v275, %v291
      %v296 = vadd.f32 %v276, %v291
      %v297 = vadd.f32 %v277, %v291
      %v298 = vadd.f32 %v278, %v291
      %v299 = vadd.f32 %v279, %v291
      %v300 = vadd.f32 %v280, %v291
      %v301 = vadd.f32 %v281, %v291
      %v302 = vadd.f32 %v282, %v291
      %v303 = vadd.f32 %v283, %v291
      %v304 = vadd.f32 %v284, %v291
      %v305 = vadd.f32 %v285, %v291
      %v306 = vadd.f32 %v286, %v291
      %v307 = vadd.f32 %v287, %v291
      %v308 = vpack.c.bf16 %v293, %v292
      %v309 = vpack.c.bf16 %v295, %v294
      %v310 = vpack.c.bf16 %v297, %v296
      %v311 = vpack.c.bf16 %v299, %v298
      %v312 = vpack.c.bf16 %v301, %v300
      %v313 = vpack.c.bf16 %v303, %v302
      %v314 = vpack.c.bf16 %v305, %v304
      %v315 = vpack.c.bf16 %v307, %v306
      %316 = vst [vmem:[#allocation2] sm:$0xff] %v308
      %317 = vst [vmem:[#allocation2 + $0x8] sm:$0xff] %v309
      %318 = vst [vmem:[#allocation2 + $0x10] sm:$0xff] %v310
      %319 = vst [vmem:[#allocation2 + $0x18] sm:$0xff] %v311
      %320 = vst [vmem:[#allocation2 + $0x20] sm:$0xff] %v312
      %321 = vst [vmem:[#allocation2 + $0x28] sm:$0xff] %v313
      %322 = vst [vmem:[#allocation2 + $0x30] sm:$0xff] %v314
      %323 = vst [vmem:[#allocation2 + $0x38] sm:$0xff] %v315
    $region37: #{tpu_custom_call.1} parent=1 // pred_fallthru
      _
    %v324 = vld [vmem:[#allocation2] sm:$0xff]
    %v325 = vld [vmem:[#allocation2 + $0x8] sm:$0xff]
    %v326 = vld [vmem:[#allocation2 + $0x10] sm:$0xff]
    %v327 = vld [vmem:[#allocation2 + $0x18] sm:$0xff]
    %v328 = vld [vmem:[#allocation2 + $0x20] sm:$0xff]
    %v329 = vld [vmem:[#allocation2 + $0x28] sm:$0xff]
    %v330 = vld [vmem:[#allocation2 + $0x30] sm:$0xff]
    %v331 = vld [vmem:[#allocation2 + $0x38] sm:$0xff]
    %v332 = vld [vmem:[#allocation8] sm:$0xf]
    %v333 = vld [vmem:[#allocation8 + $0x4] sm:$0xf]
    %v334 = vld [vmem:[#allocation8 + $0x8] sm:$0xf]
    %v335 = vld [vmem:[#allocation8 + $0xc] sm:$0xf]
    %v336 = vld [vmem:[#allocation8 + $0x10] sm:$0xf]
    %v337 = vld [vmem:[#allocation8 + $0x14] sm:$0xf]
    %v338 = vld [vmem:[#allocation8 + $0x18] sm:$0xf]
    %v339 = vld [vmem:[#allocation8 + $0x1c] sm:$0xf]
    %v340 = vld [vmem:[#allocation8 + $0x20] sm:$0xf]
    %v341 = vld [vmem:[#allocation8 + $0x24] sm:$0xf]
    %v342 = vld [vmem:[#allocation8 + $0x28] sm:$0xf]
    %v343 = vld [vmem:[#allocation8 + $0x2c] sm:$0xf]
    %v344 = vld [vmem:[#allocation8 + $0x30] sm:$0xf]
    %v345 = vld [vmem:[#allocation8 + $0x34] sm:$0xf]
    %v346 = vld [vmem:[#allocation8 + $0x38] sm:$0xf]
    %v347 = vld [vmem:[#allocation8 + $0x3c] sm:$0xf]
    %v348 = vld [vmem:[#allocation9] sm:$0x1]
    %v350 = vlaneseq
    %v351 = vshrl.u32 %v350, 7
    %v352 = vsub.s32 0, %v351
    %v353 = vrot.slane %v348, %v352
    %v371 = vunpack.c.l.b16 %v332
    %v372 = vunpack.c.l.b16 %v333
    %v373 = vunpack.c.l.b16 %v334
    %v374 = vunpack.c.l.b16 %v335
    %v375 = vunpack.c.l.b16 %v336
    %v376 = vunpack.c.l.b16 %v337
    %v377 = vunpack.c.l.b16 %v338
    %v378 = vunpack.c.l.b16 %v339
    %v379 = vunpack.c.l.b16 %v340
    %v380 = vunpack.c.l.b16 %v341
    %v381 = vunpack.c.l.b16 %v342
    %v382 = vunpack.c.l.b16 %v343
    %v383 = vunpack.c.l.b16 %v344
    %v384 = vunpack.c.l.b16 %v345
    %v385 = vunpack.c.l.b16 %v346
    %v386 = vunpack.c.l.b16 %v347
    %v387 = vpack.c.b16 %v372, %v371
    %v388 = vpack.c.b16 %v374, %v373
    %v389 = vpack.c.b16 %v376, %v375
    %v390 = vpack.c.b16 %v378, %v377
    %v391 = vpack.c.b16 %v380, %v379
    %v392 = vpack.c.b16 %v382, %v381
    %v393 = vpack.c.b16 %v384, %v383
    %v394 = vpack.c.b16 %v386, %v385
    %403 = vmatprep.subr.bf16.mxu0 0
    %404 = vmatpush1.bf16.msra.mxu0 %v387
    %405 = vmatprep.subr.bf16.mxu0 0
    %406 = vmatpush1.bf16.msra.mxu0 %v388
    %407 = vmatprep.subr.bf16.mxu0 0
    %408 = vmatpush1.bf16.msra.mxu0 %v389
    %409 = vmatprep.subr.bf16.mxu0 0
    %410 = vmatpush1.bf16.msra.mxu0 %v390
    %411 = vmatprep.subr.bf16.mxu0 0
    %412 = vmatpush1.bf16.msra.mxu0 %v391
    %413 = vmatprep.subr.bf16.mxu0 0
    %414 = vmatpush1.bf16.msra.mxu0 %v392
    %415 = vmatprep.subr.bf16.mxu0 0
    %416 = vmatpush1.bf16.msra.mxu0 %v393
    %417 = vmatprep.subr.bf16.mxu0 0
    %418 = vmatpush1.bf16.msra.mxu0 %v394
    %419 = vmatprep.subr.bf16.mxu0 0
    %420 = vmatpush1.bf16.msra.mxu0 0
    %421 = vmatprep.subr.bf16.mxu0 0
    %422 = vmatpush1.bf16.msra.mxu0 0
    %423 = vmatprep.subr.bf16.mxu0 0
    %424 = vmatpush1.bf16.msra.mxu0 0
    %425 = vmatprep.subr.bf16.mxu0 0
    %426 = vmatpush1.bf16.msra.mxu0 0
    %427 = vmatprep.subr.bf16.mxu0 0
    %428 = vmatpush1.bf16.msra.mxu0 0
    %429 = vmatprep.subr.bf16.mxu0 0
    %430 = vmatpush1.bf16.msra.mxu0 0
    %431 = vmatprep.subr.bf16.mxu0 0
    %432 = vmatpush1.bf16.msra.mxu0 0
    %433 = vmatprep.subr.bf16.mxu0 0
    %434 = vmatpush1.bf16.msra.mxu0 0
    %435 = vmatprep.mubr.bf16.mxu0 0
    %436 = vmatmul.mubr.bf16.gmra.mrb[0].mxu0 %v324
    %v437 = vpop.f32.mrb[0].mxu0
    %v438 = vadd.f32 %v353, %v437
    %v439 = vpop.f32.mrb[0].mxu0
    %v440 = vpop.f32.mrb[0].mxu0
    %v441 = vadd.f32 %v353, %v440
    %v442 = vpop.f32.mrb[0].mxu0
    %443 = vmatprep.mubr.bf16.mxu0 0
    %444 = vmatmul.mubr.bf16.gmra.mrb[0].mxu0 %v325
    %v445 = vpop.f32.mrb[0].mxu0
    %v446 = vadd.f32 %v353, %v445
    %v447 = vpop.f32.mrb[0].mxu0
    %v448 = vpop.f32.mrb[0].mxu0
    %v449 = vadd.f32 %v353, %v448
    %v450 = vpop.f32.mrb[0].mxu0
    %451 = vmatprep.mubr.bf16.mxu0 0
    %452 = vmatmul.mubr.bf16.gmra.mrb[0].mxu0 %v326
    %v453 = vpop.f32.mrb[0].mxu0
    %v454 = vadd.f32 %v353, %v453
    %v455 = vpop.f32.mrb[0].mxu0
    %v456 = vpop.f32.mrb[0].mxu0
    %v457 = vadd.f32 %v353, %v456
    %v458 = vpop.f32.mrb[0].mxu0
    %459 = vmatprep.mubr.bf16.mxu0 0
    %460 = vmatmul.mubr.bf16.gmra.mrb[0].mxu0 %v327
    %v461 = vpop.f32.mrb[0].mxu0
    %v462 = vadd.f32 %v353, %v461
    %v463 = vpop.f32.mrb[0].mxu0
    %v464 = vpop.f32.mrb[0].mxu0
    %v465 = vadd.f32 %v353, %v464
    %v466 = vpop.f32.mrb[0].mxu0
    %467 = vmatprep.mubr.bf16.mxu0 0
    %468 = vmatmul.mubr.bf16.gmra.mrb[0].mxu0 %v328
    %v469 = vpop.f32.mrb[0].mxu0
    %v470 = vadd.f32 %v353, %v469
    %v471 = vpop.f32.mrb[0].mxu0
    %v472 = vpop.f32.mrb[0].mxu0
    %v473 = vadd.f32 %v353, %v472
    %v474 = vpop.f32.mrb[0].mxu0
    %475 = vmatprep.mubr.bf16.mxu0 0
    %476 = vmatmul.mubr.bf16.gmra.mrb[0].mxu0 %v329
    %v477 = vpop.f32.mrb[0].mxu0
    %v478 = vadd.f32 %v353, %v477
    %v479 = vpop.f32.mrb[0].mxu0
    %v480 = vpop.f32.mrb[0].mxu0
    %v481 = vadd.f32 %v353, %v480
    %v482 = vpop.f32.mrb[0].mxu0
    %483 = vmatprep.mubr.bf16.mxu0 0
    %484 = vmatmul.mubr.bf16.gmra.mrb[0].mxu0 %v330
    %v485 = vpop.f32.mrb[0].mxu0
    %v486 = vadd.f32 %v353, %v485
    %v487 = vpop.f32.mrb[0].mxu0
    %v488 = vpop.f32.mrb[0].mxu0
    %v489 = vadd.f32 %v353, %v488
    %v490 = vpop.f32.mrb[0].mxu0
    %491 = vmatprep.mubr.bf16.mxu0 0
    %492 = vmatmul.mubr.bf16.gmra.mrb[0].mxu0 %v331
    %v493 = vpop.f32.mrb[0].mxu0
    %v494 = vadd.f32 %v353, %v493
    %v495 = vpop.f32.mrb[0].mxu0
    %v496 = vpop.f32.mrb[0].mxu0
    %v497 = vadd.f32 %v353, %v496
    %v498 = vpop.f32.mrb[0].mxu0
    %499 = vdwg.mxu0
    %500 = vst [vmem:[#allocation11] sm:$0xff] %v438
    %501 = vst [vmem:[#allocation11 + $0x8] sm:$0xff] %v441
    %502 = vst [vmem:[#allocation11 + $0x10] sm:$0xff] %v446
    %503 = vst [vmem:[#allocation11 + $0x18] sm:$0xff] %v449
    %504 = vst [vmem:[#allocation11 + $0x20] sm:$0xff] %v454
    %505 = vst [vmem:[#allocation11 + $0x28] sm:$0xff] %v457
    %506 = vst [vmem:[#allocation11 + $0x30] sm:$0xff] %v462
    %507 = vst [vmem:[#allocation11 + $0x38] sm:$0xff] %v465
    %508 = vst [vmem:[#allocation11 + $0x40] sm:$0xff] %v470
    %509 = vst [vmem:[#allocation11 + $0x48] sm:$0xff] %v473
    %510 = vst [vmem:[#allocation11 + $0x50] sm:$0xff] %v478
    %511 = vst [vmem:[#allocation11 + $0x58] sm:$0xff] %v481
    %512 = vst [vmem:[#allocation11 + $0x60] sm:$0xff] %v486
    %513 = vst [vmem:[#allocation11 + $0x68] sm:$0xff] %v489
    %514 = vst [vmem:[#allocation11 + $0x70] sm:$0xff] %v494
    %515 = vst [vmem:[#allocation11 + $0x78] sm:$0xff] %v497
    // Predicated region
    $region38: #{tpu_custom_call.1} parent=1 // pred_check
      _
    $region39: #{tpu_custom_call.1} parent=1 // pred_check_branch
      %517 = sbr.rel (0) target = $region41
    $region40: #{tpu_custom_call.1} parent=1 // pred_region
      %s519 = ssub.s32 2048, 2048
      %520 = vsyncadd [#allocation5], %s519
      %s521 = sshll.u32 [#allocation11], 4
      %s522 = int_to_ptr.vmem [resolvable:$true] %s521
      %527 = dma.vmem_to_hbm [thread:$0]  %s522, 2048, %s4, [#allocation5], 128, 128, 8
    $region41: #{tpu_custom_call.1} parent=1 // pred_fallthru
      _
    // Predicated region
    $region42: #{tpu_custom_call.1} parent=1 // pred_check
      _
    $region43: #{tpu_custom_call.1} parent=1 // pred_check_branch
      %529 = sbr.rel (0) target = $region45
    $region44: #{tpu_custom_call.1} parent=1 // pred_region
      %530 = dma.done [#allocation5], 2048
    $region45: #{tpu_custom_call.1} parent=1 // pred_fallthru
      _
    %531 = vsyncpa [#allocation4], 1
    %532 = vsyncpa [#allocation7], 1
    %533 = vsyncpa [#allocation10], 1
    %534 = vsyncpa [#allocation5], 1

</llo_original>
